<compile_context>
chip_gen: v6e
topology: v6e:2x2x1
jax: 0.10.0
libtpu: 0.0.40
codegen_flags: <defaults>
</compile_context>

<pallas_src>
import jax
import jax.numpy as jnp
from jax import lax
from jax.experimental import pallas as pl
from jax.experimental.pallas import tpu as pltpu


# ----------------------------------------------------------------------------
# In-kernel helpers
# ----------------------------------------------------------------------------
def _layer_norm(x, gamma, beta, eps=1e-5):
    # PyTorch LayerNorm: biased variance, eps inside the sqrt.
    mean = jnp.mean(x, axis=-1, keepdims=True)
    xc = x - mean
    var = jnp.mean(xc * xc, axis=-1, keepdims=True)
    return xc * lax.rsqrt(var + eps) * gamma + beta


# ----------------------------------------------------------------------------
# Pallas kernel: one (TM, d_model) token tile per grid step, fully fused FFN.
# ----------------------------------------------------------------------------
def ffn_kernel(tgt_ref,            # (TM, D)   f32
               tin_ref,            # (TM, D)   f32
               w1_ref, b1_ref,     # (D, F) bf16, (1, F) f32
               w2_ref, b2_ref,     # (F, D) bf16, (1, D) f32
               g2_ref, be2_ref,    # (1, D) f32  LayerNorm norm2
               g3_ref, be3_ref,    # (1, D) f32  LayerNorm norm3
               out_ref):           # (TM, D)   f32
    # residual add (dropout2 == identity in eval mode)
    x = tgt_ref[...] + tin_ref[...]
    # norm2
    x = _layer_norm(x, g2_ref[...], be2_ref[...])
    # linear1 + relu   (dropout == identity)
    h = jnp.dot(x.astype(jnp.bfloat16), w1_ref[...],
                preferred_element_type=jnp.float32) + b1_ref[...]
    h = jnp.maximum(h, 0.0)
    # linear2
    y = jnp.dot(h.astype(jnp.bfloat16), w2_ref[...],
                preferred_element_type=jnp.float32) + b2_ref[...]
    # residual add (dropout3 == identity) + norm3
    x = x + y
    x = _layer_norm(x, g3_ref[...], be3_ref[...])
    out_ref[...] = x.astype(out_ref.dtype)


# ----------------------------------------------------------------------------
# Wrapper: flatten leading dims to M tokens, tile M, call the kernel.
# ----------------------------------------------------------------------------
def ffn_forward(tgt, tgt_input, params, tile_m=256):
    """tgt, tgt_input: (..., d_model) float32.  Returns same shape."""
    w1, b1, w2, b2, g2, be2, g3, be3 = params
    orig_shape = tgt.shape
    D = orig_shape[-1]
    F = w1.shape[1]

    M = 1
    for s in orig_shape[:-1]:
        M *= s
    x2 = tgt.reshape(M, D)
    xi2 = tgt_input.reshape(M, D)

    # Pick a token-tile size: multiple of 8 (sublane) unless it is the full M.
    tm = min(tile_m, M)
    if tm != M and tm % 8 != 0:
        tm = max(8, (tm // 8) * 8)
    m_pad = ((M + tm - 1) // tm) * tm
    if m_pad != M:
        pad = m_pad - M
        x2 = jnp.pad(x2, ((0, pad), (0, 0)))
        xi2 = jnp.pad(xi2, ((0, pad), (0, 0)))

    tok = lambda m: (m, 0)     # token-tiled arrays
    full = lambda m: (0, 0)    # resident weights / biases / LN params

    out = pl.pallas_call(
        ffn_kernel,
        out_shape=jax.ShapeDtypeStruct((m_pad, D), jnp.float32),
        grid_spec=pltpu.PrefetchScalarGridSpec(
            num_scalar_prefetch=0,
            grid=(m_pad // tm,),
            in_specs=[
                pl.BlockSpec((tm, D), tok),
                pl.BlockSpec((tm, D), tok),
                pl.BlockSpec((D, F), full), pl.BlockSpec((1, F), full),
                pl.BlockSpec((F, D), full), pl.BlockSpec((1, D), full),
                pl.BlockSpec((1, D), full), pl.BlockSpec((1, D), full),
                pl.BlockSpec((1, D), full), pl.BlockSpec((1, D), full),
            ],
            out_specs=pl.BlockSpec((tm, D), tok),
        ),
        compiler_params=pltpu.CompilerParams(
            dimension_semantics=("parallel",)),
    )(x2, xi2, w1, b1, w2, b2, g2, be2, g3, be3)

    return out[:M].reshape(orig_shape)


# ----------------------------------------------------------------------------
# Deterministic parameter construction (Linear + LayerNorm params).
# ----------------------------------------------------------------------------
def make_ffn_params(d_model, dim_feedforward, seed=0):
    keys = jax.random.split(jax.random.PRNGKey(seed), 8)
    # linear1: (d_model -> dim_feedforward), stored as (D, F) for x @ W
    w1 = jax.random.normal(keys[0], (d_model, dim_feedforward),
                           jnp.float32) / jnp.sqrt(d_model)
    b1 = 0.01 * jax.random.normal(keys[1], (1, dim_feedforward), jnp.float32)
    # linear2: (dim_feedforward -> d_model), stored as (F, D)
    w2 = jax.random.normal(keys[2], (dim_feedforward, d_model),
                           jnp.float32) / jnp.sqrt(dim_feedforward)
    b2 = 0.01 * jax.random.normal(keys[3], (1, d_model), jnp.float32)
    # LayerNorm norm2 / norm3 affine params
    g2 = 1.0 + 0.1 * jax.random.normal(keys[4], (1, d_model), jnp.float32)
    be2 = 0.1 * jax.random.normal(keys[5], (1, d_model), jnp.float32)
    g3 = 1.0 + 0.1 * jax.random.normal(keys[6], (1, d_model), jnp.float32)
    be3 = 0.1 * jax.random.normal(keys[7], (1, d_model), jnp.float32)
    # Weight matrices in bf16 (MXU-native, half the VMEM/HBM footprint);
    # biases / LN params stay f32 for the epilogue.
    return (w1.astype(jnp.bfloat16), b1,
            w2.astype(jnp.bfloat16), b2,
            g2, be2, g3, be3)


if __name__ == "__main__":
    B, S, D, FF = 2, 8, 32, 64          # small, TPU-friendly sizes
    params = make_ffn_params(D, FF, seed=0)

    k1, k2 = jax.random.split(jax.random.PRNGKey(0))
    tgt = jax.random.normal(k1, (B, S, D), jnp.float32)
    tgt_input = jax.random.normal(k2, (B, S, D), jnp.float32)

    # tile_m=8 -> 2 token tiles, exercises the tiled/pipelined path.
    out = ffn_forward(tgt, tgt_input, params, tile_m=8)
    jax.block_until_ready(out)

    assert out.shape == (B, S, D)
    print("KERNEL_OK")
</pallas_src>

<mosaic_0001>
module attributes {stable_mosaic.version = 11 : i64} {
  func.func @ffn_kernel(%arg0: i32, %arg1: memref<8x32xf32, #tpu.memory_space<vmem>>, %arg2: memref<8x32xf32, #tpu.memory_space<vmem>>, %arg3: memref<32x64xbf16, #tpu.memory_space<vmem>>, %arg4: memref<1x64xf32, #tpu.memory_space<vmem>>, %arg5: memref<64x32xbf16, #tpu.memory_space<vmem>>, %arg6: memref<1x32xf32, #tpu.memory_space<vmem>>, %arg7: memref<1x32xf32, #tpu.memory_space<vmem>>, %arg8: memref<1x32xf32, #tpu.memory_space<vmem>>, %arg9: memref<1x32xf32, #tpu.memory_space<vmem>>, %arg10: memref<1x32xf32, #tpu.memory_space<vmem>>, %arg11: memref<8x32xf32, #tpu.memory_space<vmem>>) attributes {dimension_semantics = [#tpu.dimension_semantics<parallel>], iteration_bounds = array<i64: 2>, scalar_prefetch = 0 : i64, scratch_operands = 0 : i64, tpu.core_type = #tpu.core_type<tc>, window_params = [{transform_indices = @transform_0, window_bounds = array<i64: 8, 32>}, {transform_indices = @transform_1, window_bounds = array<i64: 8, 32>}, {pipeline_mode = #tpu.pipeline_mode<synchronous>, transform_indices = @transform_2, window_bounds = array<i64: 32, 64>}, {pipeline_mode = #tpu.pipeline_mode<synchronous>, transform_indices = @transform_3, window_bounds = array<i64: 1, 64>}, {pipeline_mode = #tpu.pipeline_mode<synchronous>, transform_indices = @transform_4, window_bounds = array<i64: 64, 32>}, {pipeline_mode = #tpu.pipeline_mode<synchronous>, transform_indices = @transform_5, window_bounds = array<i64: 1, 32>}, {pipeline_mode = #tpu.pipeline_mode<synchronous>, transform_indices = @transform_6, window_bounds = array<i64: 1, 32>}, {pipeline_mode = #tpu.pipeline_mode<synchronous>, transform_indices = @transform_7, window_bounds = array<i64: 1, 32>}, {pipeline_mode = #tpu.pipeline_mode<synchronous>, transform_indices = @transform_8, window_bounds = array<i64: 1, 32>}, {pipeline_mode = #tpu.pipeline_mode<synchronous>, transform_indices = @transform_9, window_bounds = array<i64: 1, 32>}, {transform_indices = @transform_10, window_bounds = array<i64: 8, 32>}]} {
    %c0 = arith.constant 0 : index
    %c0_0 = arith.constant 0 : index
    %0 = vector.load %arg1[%c0, %c0_0] : memref<8x32xf32, #tpu.memory_space<vmem>>, vector<8x32xf32>
    %c0_1 = arith.constant 0 : index
    %c0_2 = arith.constant 0 : index
    %1 = vector.load %arg2[%c0_1, %c0_2] : memref<8x32xf32, #tpu.memory_space<vmem>>, vector<8x32xf32>
    %2 = arith.addf %0, %1 : vector<8x32xf32>
    %c0_3 = arith.constant 0 : index
    %c0_4 = arith.constant 0 : index
    %3 = vector.load %arg7[%c0_3, %c0_4] : memref<1x32xf32, #tpu.memory_space<vmem>>, vector<1x32xf32>
    %c0_5 = arith.constant 0 : index
    %c0_6 = arith.constant 0 : index
    %4 = vector.load %arg8[%c0_5, %c0_6] : memref<1x32xf32, #tpu.memory_space<vmem>>, vector<1x32xf32>
    %cst = arith.constant dense<0.000000e+00> : vector<8xf32>
    %5 = vector.multi_reduction <add>, %2, %cst [1] : vector<8x32xf32> to vector<8xf32>
    %6 = vector.shape_cast %5 : vector<8xf32> to vector<8x1xf32>
    %cst_7 = arith.constant 3.200000e+01 : f32
    %7 = vector.broadcast %cst_7 : f32 to vector<8x1xf32>
    %8 = arith.divf %6, %7 : vector<8x1xf32>
    %9 = vector.broadcast %8 : vector<8x1xf32> to vector<8x32xf32>
    %10 = arith.subf %2, %9 : vector<8x32xf32>
    %11 = arith.mulf %10, %10 : vector<8x32xf32>
    %cst_8 = arith.constant dense<0.000000e+00> : vector<8xf32>
    %12 = vector.multi_reduction <add>, %11, %cst_8 [1] : vector<8x32xf32> to vector<8xf32>
    %13 = vector.shape_cast %12 : vector<8xf32> to vector<8x1xf32>
    %cst_9 = arith.constant 3.200000e+01 : f32
    %14 = vector.broadcast %cst_9 : f32 to vector<8x1xf32>
    %15 = arith.divf %13, %14 : vector<8x1xf32>
    %cst_10 = arith.constant 9.99999974E-6 : f32
    %16 = vector.broadcast %cst_10 : f32 to vector<8x1xf32>
    %17 = arith.addf %15, %16 : vector<8x1xf32>
    %18 = math.rsqrt %17 : vector<8x1xf32>
    %19 = vector.broadcast %18 : vector<8x1xf32> to vector<8x32xf32>
    %20 = arith.mulf %10, %19 : vector<8x32xf32>
    %21 = vector.broadcast %3 : vector<1x32xf32> to vector<8x32xf32>
    %22 = arith.mulf %20, %21 : vector<8x32xf32>
    %23 = vector.broadcast %4 : vector<1x32xf32> to vector<8x32xf32>
    %24 = arith.addf %22, %23 : vector<8x32xf32>
    %25 = arith.truncf %24 : vector<8x32xf32> to vector<8x32xbf16>
    %c0_11 = arith.constant 0 : index
    %c0_12 = arith.constant 0 : index
    %26 = vector.load %arg3[%c0_11, %c0_12] : memref<32x64xbf16, #tpu.memory_space<vmem>>, vector<32x64xbf16>
    %cst_13 = arith.constant dense<0.000000e+00> : vector<8x64xf32>
    %27 = tpu.matmul %25, %26, %cst_13 {dimension_numbers = #tpu.dot_dimension_numbers<[1], [0], [0], [1], [0, 0, 1, 1], [], []>} : vector<8x32xbf16>, vector<32x64xbf16>, vector<8x64xf32> -> vector<8x64xf32>
    %c0_14 = arith.constant 0 : index
    %c0_15 = arith.constant 0 : index
    %28 = vector.load %arg4[%c0_14, %c0_15] : memref<1x64xf32, #tpu.memory_space<vmem>>, vector<1x64xf32>
    %29 = vector.broadcast %28 : vector<1x64xf32> to vector<8x64xf32>
    %30 = arith.addf %27, %29 : vector<8x64xf32>
    %cst_16 = arith.constant 0.000000e+00 : f32
    %31 = vector.broadcast %cst_16 : f32 to vector<8x64xf32>
    %32 = arith.maximumf %30, %31 : vector<8x64xf32>
    %33 = arith.truncf %32 : vector<8x64xf32> to vector<8x64xbf16>
    %c0_17 = arith.constant 0 : index
    %c0_18 = arith.constant 0 : index
    %34 = vector.load %arg5[%c0_17, %c0_18] : memref<64x32xbf16, #tpu.memory_space<vmem>>, vector<64x32xbf16>
    %cst_19 = arith.constant dense<0.000000e+00> : vector<8x32xf32>
    %35 = tpu.matmul %33, %34, %cst_19 {dimension_numbers = #tpu.dot_dimension_numbers<[1], [0], [0], [1], [0, 0, 1, 1], [], []>} : vector<8x64xbf16>, vector<64x32xbf16>, vector<8x32xf32> -> vector<8x32xf32>
    %c0_20 = arith.constant 0 : index
    %c0_21 = arith.constant 0 : index
    %36 = vector.load %arg6[%c0_20, %c0_21] : memref<1x32xf32, #tpu.memory_space<vmem>>, vector<1x32xf32>
    %37 = vector.broadcast %36 : vector<1x32xf32> to vector<8x32xf32>
    %38 = arith.addf %35, %37 : vector<8x32xf32>
    %39 = arith.addf %24, %38 : vector<8x32xf32>
    %c0_22 = arith.constant 0 : index
    %c0_23 = arith.constant 0 : index
    %40 = vector.load %arg9[%c0_22, %c0_23] : memref<1x32xf32, #tpu.memory_space<vmem>>, vector<1x32xf32>
    %c0_24 = arith.constant 0 : index
    %c0_25 = arith.constant 0 : index
    %41 = vector.load %arg10[%c0_24, %c0_25] : memref<1x32xf32, #tpu.memory_space<vmem>>, vector<1x32xf32>
    %cst_26 = arith.constant dense<0.000000e+00> : vector<8xf32>
    %42 = vector.multi_reduction <add>, %39, %cst_26 [1] : vector<8x32xf32> to vector<8xf32>
    %43 = vector.shape_cast %42 : vector<8xf32> to vector<8x1xf32>
    %cst_27 = arith.constant 3.200000e+01 : f32
    %44 = vector.broadcast %cst_27 : f32 to vector<8x1xf32>
    %45 = arith.divf %43, %44 : vector<8x1xf32>
    %46 = vector.broadcast %45 : vector<8x1xf32> to vector<8x32xf32>
    %47 = arith.subf %39, %46 : vector<8x32xf32>
    %48 = arith.mulf %47, %47 : vector<8x32xf32>
    %cst_28 = arith.constant dense<0.000000e+00> : vector<8xf32>
    %49 = vector.multi_reduction <add>, %48, %cst_28 [1] : vector<8x32xf32> to vector<8xf32>
    %50 = vector.shape_cast %49 : vector<8xf32> to vector<8x1xf32>
    %cst_29 = arith.constant 3.200000e+01 : f32
    %51 = vector.broadcast %cst_29 : f32 to vector<8x1xf32>
    %52 = arith.divf %50, %51 : vector<8x1xf32>
    %cst_30 = arith.constant 9.99999974E-6 : f32
    %53 = vector.broadcast %cst_30 : f32 to vector<8x1xf32>
    %54 = arith.addf %52, %53 : vector<8x1xf32>
    %55 = math.rsqrt %54 : vector<8x1xf32>
    %56 = vector.broadcast %55 : vector<8x1xf32> to vector<8x32xf32>
    %57 = arith.mulf %47, %56 : vector<8x32xf32>
    %58 = vector.broadcast %40 : vector<1x32xf32> to vector<8x32xf32>
    %59 = arith.mulf %57, %58 : vector<8x32xf32>
    %60 = vector.broadcast %41 : vector<1x32xf32> to vector<8x32xf32>
    %61 = arith.addf %59, %60 : vector<8x32xf32>
    %c0_31 = arith.constant 0 : index
    %c0_32 = arith.constant 0 : index
    %62 = vector.load %arg11[%c0_31, %c0_32] : memref<8x32xf32, #tpu.memory_space<vmem>>, vector<8x32xf32>
    tpu.vector_store %arg11[%c0_31, %c0_32], %61 {strides = array<i32>} : memref<8x32xf32, #tpu.memory_space<vmem>>, vector<8x32xf32>,
    return
  }
  func.func @transform_0(%arg0: i32) -> (i32, i32) {
    %c0_i32 = arith.constant 0 : i32
    %c0_i32_0 = arith.constant 0 : i32
    return %arg0, %c0_i32 : i32, i32
  }
  func.func @transform_1(%arg0: i32) -> (i32, i32) {
    %c0_i32 = arith.constant 0 : i32
    %c0_i32_0 = arith.constant 0 : i32
    return %arg0, %c0_i32 : i32, i32
  }
  func.func @transform_2(%arg0: i32) -> (i32, i32) {
    %c0_i32 = arith.constant 0 : i32
    %c0_i32_0 = arith.constant 0 : i32
    %c0_i32_1 = arith.constant 0 : i32
    return %c0_i32, %c0_i32_0 : i32, i32
  }
  func.func @transform_3(%arg0: i32) -> (i32, i32) {
    %c0_i32 = arith.constant 0 : i32
    %c0_i32_0 = arith.constant 0 : i32
    %c0_i32_1 = arith.constant 0 : i32
    return %c0_i32, %c0_i32_0 : i32, i32
  }
  func.func @transform_4(%arg0: i32) -> (i32, i32) {
    %c0_i32 = arith.constant 0 : i32
    %c0_i32_0 = arith.constant 0 : i32
    %c0_i32_1 = arith.constant 0 : i32
    return %c0_i32, %c0_i32_0 : i32, i32
  }
  func.func @transform_5(%arg0: i32) -> (i32, i32) {
    %c0_i32 = arith.constant 0 : i32
    %c0_i32_0 = arith.constant 0 : i32
    %c0_i32_1 = arith.constant 0 : i32
    return %c0_i32, %c0_i32_0 : i32, i32
  }
  func.func @transform_6(%arg0: i32) -> (i32, i32) {
    %c0_i32 = arith.constant 0 : i32
    %c0_i32_0 = arith.constant 0 : i32
    %c0_i32_1 = arith.constant 0 : i32
    return %c0_i32, %c0_i32_0 : i32, i32
  }
  func.func @transform_7(%arg0: i32) -> (i32, i32) {
    %c0_i32 = arith.constant 0 : i32
    %c0_i32_0 = arith.constant 0 : i32
    %c0_i32_1 = arith.constant 0 : i32
    return %c0_i32, %c0_i32_0 : i32, i32
  }
  func.func @transform_8(%arg0: i32) -> (i32, i32) {
    %c0_i32 = arith.constant 0 : i32
    %c0_i32_0 = arith.constant 0 : i32
    %c0_i32_1 = arith.constant 0 : i32
    return %c0_i32, %c0_i32_0 : i32, i32
  }
  func.func @transform_9(%arg0: i32) -> (i32, i32) {
    %c0_i32 = arith.constant 0 : i32
    %c0_i32_0 = arith.constant 0 : i32
    %c0_i32_1 = arith.constant 0 : i32
    return %c0_i32, %c0_i32_0 : i32, i32
  }
  func.func @transform_10(%arg0: i32) -> (i32, i32) {
    %c0_i32 = arith.constant 0 : i32
    %c0_i32_0 = arith.constant 0 : i32
    return %arg0, %c0_i32 : i32, i32
  }
}

</mosaic_0001>

<llo_original>
// kernel: tpu_custom_call.1
$region0: #{tpu_custom_call.1}
  #allocation0 [shape = 'u32[]', space=smem, size = 0x4, offset = 0x4, fixed_abs, tag = 'smem constant byte address 0x4 - core index']
  #allocation1 [shape = 'u32[144,128]{1,0:T(1,128)}', space=vmem, size = 0x12000, scoped, tag = 'internal scratch']
  %s0 = inlined_call_operand.vmem [shape: f32[16,32], index: 0, kind: input, shape index: {}]
  %s1 = inlined_call_operand.vmem [shape: f32[16,32], index: 1, kind: input, shape index: {}]
  %s2 = inlined_call_operand.vmem [shape: bf16[32,64], index: 2, kind: input, shape index: {}]
  %s3 = inlined_call_operand.vmem [shape: f32[1,64], index: 3, kind: input, shape index: {}]
  %s4 = inlined_call_operand.vmem [shape: bf16[64,32], index: 4, kind: input, shape index: {}]
  %s5 = inlined_call_operand.vmem [shape: f32[1,32], index: 5, kind: input, shape index: {}]
  %s6 = inlined_call_operand.vmem [shape: f32[1,32], index: 6, kind: input, shape index: {}]
  %s7 = inlined_call_operand.vmem [shape: f32[1,32], index: 7, kind: input, shape index: {}]
  %s8 = inlined_call_operand.vmem [shape: f32[1,32], index: 8, kind: input, shape index: {}]
  %s9 = inlined_call_operand.vmem [shape: f32[1,32], index: 9, kind: input, shape index: {}]
  %s10 = inlined_call_operand.hbm [shape: f32[16,32], index: 10, kind: output, shape index: {}]
  %s11 = sld [smem:[#allocation0]]
  $region73: #{tpu_custom_call.1} parent=0
    _
  %s13 = ssub.s32 1, %s11
  %s14 = scalar_select 0, %s13, %s11
  $region1: #{tpu_custom_call.1} parent=0
    #allocation2 [shape = 'u8[8192]{0}', space=vmem, size = 0x2000, scoped, tag = 'output window, operand 0']
    #allocation3 [shape = 's32[2]{0}', space=sflag, size = 0x8, scoped, tag = 'scoped memory for tpu_custom_call.1']
    %15 = vsyncpa [#allocation3], 0
    %s16 = scalar_lea.sflag [#allocation3], 1
    %17 = vsyncpa %s16, 0
    loop: start=0, step=1, limit=4
    $region2: #{tpu_custom_call.1} parent=1 // loop_pre_header
      _
    $region3: #{tpu_custom_call.1} parent=1 // loop_header
      %s19 = sphi 0, %s23
      %p20 = scmp.ge.s32.totalorder %s19, 4
      %s29 = sphi 0, %s31
      %s32 = sphi 0, %s29
      %s33 = sphi 0, %s32
      %s49 = sphi 0, %s33
      %s55 = sphi 0, %s57
      %s58 = sphi 0, %s55
      %s59 = sphi 0, %s58
      %s75 = sphi 0, %s59
      %s79 = sphi 0, %s79
      %s81 = sphi 0, %s79
      %s82 = sphi 0, %s81
      %s96 = sphi 0, %s82
      %s100 = sphi 0, %s100
      %s102 = sphi 0, %s100
      %s103 = sphi 0, %s102
      %s117 = sphi 0, %s103
      %s121 = sphi 0, %s121
      %s123 = sphi 0, %s121
      %s124 = sphi 0, %s123
      %s138 = sphi 0, %s124
      %s142 = sphi 0, %s142
      %s144 = sphi 0, %s142
      %s145 = sphi 0, %s144
      %s159 = sphi 0, %s145
      %s163 = sphi 0, %s163
      %s165 = sphi 0, %s163
      %s166 = sphi 0, %s165
      %s180 = sphi 0, %s166
      %s184 = sphi 0, %s184
      %s186 = sphi 0, %s184
      %s187 = sphi 0, %s186
      %s201 = sphi 0, %s187
      %s205 = sphi 0, %s205
      %s207 = sphi 0, %s205
      %s208 = sphi 0, %s207
      %s222 = sphi 0, %s208
      %s226 = sphi 0, %s226
      %s228 = sphi 0, %s226
      %s229 = sphi 0, %s228
      %s243 = sphi 0, %s229
      %s249 = sphi 0, %s251
      %s252 = sphi 0, %s249
      %s253 = sphi 0, %s252
      %s269 = sphi 0, %s253
    $region4: #{tpu_custom_call.1} parent=1 // loop_header_branch
      %22 = sbr.rel (%p20) target = $region8
    $region5: #{tpu_custom_call.1} parent=1 // loop_body
      %s24 = ssub.s32 %s19, 1
      %s25 = ssub.s32 %s19, 2
      %s26 = sadd.s32 %s19, 1
      %s27 = ssub.s32 %s19, %s26
      %p28 = scmp.eq.s32.totalorder %s27, 0
      %s30 = sadd.s32 %s29, 1
      %s31 = scalar_select %p28, %s29, %s30
      %p34 = pneg %p28
      %p35 = scmp.eq.s32.totalorder %s19, 1
      %p36 = por %p34, %p35
      %p37 = scmp.ne.s32.totalorder %s29, %s32
      %p38 = scmp.eq.s32.totalorder %s19, 0
      %p39 = por %p37, %p38
      %p40 = scmp.ne.s32.totalorder %s29, %s32
      %p41 = scmp.eq.s32.totalorder %s24, 1
      %p42 = por %p40, %p41
      %p43 = scmp.ne.s32.totalorder %s32, %s33
      %p44 = scmp.eq.s32.totalorder %s24, 0
      %p45 = por %p43, %p44
      %p46 = scmp.ne.s32.totalorder %s32, %s33
      %p47 = scmp.eq.s32.totalorder %s25, 1
      %p48 = por %p46, %p47
      %p50 = scmp.ne.s32.totalorder %s33, %s49
      %p51 = scmp.eq.s32.totalorder %s25, 0
      %p52 = por %p50, %p51
      %s53 = ssub.s32 %s19, %s26
      %p54 = scmp.eq.s32.totalorder %s53, 0
      %s56 = sadd.s32 %s55, 1
      %s57 = scalar_select %p54, %s55, %s56
      %p60 = pneg %p54
      %p61 = scmp.eq.s32.totalorder %s19, 1
      %p62 = por %p60, %p61
      %p63 = scmp.ne.s32.totalorder %s55, %s58
      %p64 = scmp.eq.s32.totalorder %s19, 0
      %p65 = por %p63, %p64
      %p66 = scmp.ne.s32.totalorder %s55, %s58
      %p67 = scmp.eq.s32.totalorder %s24, 1
      %p68 = por %p66, %p67
      %p69 = scmp.ne.s32.totalorder %s58, %s59
      %p70 = scmp.eq.s32.totalorder %s24, 0
      %p71 = por %p69, %p70
      %p72 = scmp.ne.s32.totalorder %s58, %s59
      %p73 = scmp.eq.s32.totalorder %s25, 1
      %p74 = por %p72, %p73
      %p76 = scmp.ne.s32.totalorder %s59, %s75
      %p77 = scmp.eq.s32.totalorder %s25, 0
      %p78 = por %p76, %p77
      %s80 = sadd.s32 %s79, 1
      %p83 = scmp.eq.s32.totalorder %s19, 1
      %p84 = scmp.ne.s32.totalorder %s79, %s81
      %p85 = scmp.eq.s32.totalorder %s19, 0
      %p86 = por %p84, %p85
      %p87 = scmp.ne.s32.totalorder %s79, %s81
      %p88 = scmp.eq.s32.totalorder %s24, 1
      %p89 = por %p87, %p88
      %p90 = scmp.ne.s32.totalorder %s81, %s82
      %p91 = scmp.eq.s32.totalorder %s24, 0
      %p92 = por %p90, %p91
      %p93 = scmp.ne.s32.totalorder %s81, %s82
      %p94 = scmp.eq.s32.totalorder %s25, 1
      %p95 = por %p93, %p94
      %p97 = scmp.ne.s32.totalorder %s82, %s96
      %p98 = scmp.eq.s32.totalorder %s25, 0
      %p99 = por %p97, %p98
      %s101 = sadd.s32 %s100, 1
      %p104 = scmp.eq.s32.totalorder %s19, 1
      %p105 = scmp.ne.s32.totalorder %s100, %s102
      %p106 = scmp.eq.s32.totalorder %s19, 0
      %p107 = por %p105, %p106
      %p108 = scmp.ne.s32.totalorder %s100, %s102
      %p109 = scmp.eq.s32.totalorder %s24, 1
      %p110 = por %p108, %p109
      %p111 = scmp.ne.s32.totalorder %s102, %s103
      %p112 = scmp.eq.s32.totalorder %s24, 0
      %p113 = por %p111, %p112
      %p114 = scmp.ne.s32.totalorder %s102, %s103
      %p115 = scmp.eq.s32.totalorder %s25, 1
      %p116 = por %p114, %p115
      %p118 = scmp.ne.s32.totalorder %s103, %s117
      %p119 = scmp.eq.s32.totalorder %s25, 0
      %p120 = por %p118, %p119
      %s122 = sadd.s32 %s121, 1
      %p125 = scmp.eq.s32.totalorder %s19, 1
      %p126 = scmp.ne.s32.totalorder %s121, %s123
      %p127 = scmp.eq.s32.totalorder %s19, 0
      %p128 = por %p126, %p127
      %p129 = scmp.ne.s32.totalorder %s121, %s123
      %p130 = scmp.eq.s32.totalorder %s24, 1
      %p131 = por %p129, %p130
      %p132 = scmp.ne.s32.totalorder %s123, %s124
      %p133 = scmp.eq.s32.totalorder %s24, 0
      %p134 = por %p132, %p133
      %p135 = scmp.ne.s32.totalorder %s123, %s124
      %p136 = scmp.eq.s32.totalorder %s25, 1
      %p137 = por %p135, %p136
      %p139 = scmp.ne.s32.totalorder %s124, %s138
      %p140 = scmp.eq.s32.totalorder %s25, 0
      %p141 = por %p139, %p140
      %s143 = sadd.s32 %s142, 1
      %p146 = scmp.eq.s32.totalorder %s19, 1
      %p147 = scmp.ne.s32.totalorder %s142, %s144
      %p148 = scmp.eq.s32.totalorder %s19, 0
      %p149 = por %p147, %p148
      %p150 = scmp.ne.s32.totalorder %s142, %s144
      %p151 = scmp.eq.s32.totalorder %s24, 1
      %p152 = por %p150, %p151
      %p153 = scmp.ne.s32.totalorder %s144, %s145
      %p154 = scmp.eq.s32.totalorder %s24, 0
      %p155 = por %p153, %p154
      %p156 = scmp.ne.s32.totalorder %s144, %s145
      %p157 = scmp.eq.s32.totalorder %s25, 1
      %p158 = por %p156, %p157
      %p160 = scmp.ne.s32.totalorder %s145, %s159
      %p161 = scmp.eq.s32.totalorder %s25, 0
      %p162 = por %p160, %p161
      %s164 = sadd.s32 %s163, 1
      %p167 = scmp.eq.s32.totalorder %s19, 1
      %p168 = scmp.ne.s32.totalorder %s163, %s165
      %p169 = scmp.eq.s32.totalorder %s19, 0
      %p170 = por %p168, %p169
      %p171 = scmp.ne.s32.totalorder %s163, %s165
      %p172 = scmp.eq.s32.totalorder %s24, 1
      %p173 = por %p171, %p172
      %p174 = scmp.ne.s32.totalorder %s165, %s166
      %p175 = scmp.eq.s32.totalorder %s24, 0
      %p176 = por %p174, %p175
      %p177 = scmp.ne.s32.totalorder %s165, %s166
      %p178 = scmp.eq.s32.totalorder %s25, 1
      %p179 = por %p177, %p178
      %p181 = scmp.ne.s32.totalorder %s166, %s180
      %p182 = scmp.eq.s32.totalorder %s25, 0
      %p183 = por %p181, %p182
      %s185 = sadd.s32 %s184, 1
      %p188 = scmp.eq.s32.totalorder %s19, 1
      %p189 = scmp.ne.s32.totalorder %s184, %s186
      %p190 = scmp.eq.s32.totalorder %s19, 0
      %p191 = por %p189, %p190
      %p192 = scmp.ne.s32.totalorder %s184, %s186
      %p193 = scmp.eq.s32.totalorder %s24, 1
      %p194 = por %p192, %p193
      %p195 = scmp.ne.s32.totalorder %s186, %s187
      %p196 = scmp.eq.s32.totalorder %s24, 0
      %p197 = por %p195, %p196
      %p198 = scmp.ne.s32.totalorder %s186, %s187
      %p199 = scmp.eq.s32.totalorder %s25, 1
      %p200 = por %p198, %p199
      %p202 = scmp.ne.s32.totalorder %s187, %s201
      %p203 = scmp.eq.s32.totalorder %s25, 0
      %p204 = por %p202, %p203
      %s206 = sadd.s32 %s205, 1
      %p209 = scmp.eq.s32.totalorder %s19, 1
      %p210 = scmp.ne.s32.totalorder %s205, %s207
      %p211 = scmp.eq.s32.totalorder %s19, 0
      %p212 = por %p210, %p211
      %p213 = scmp.ne.s32.totalorder %s205, %s207
      %p214 = scmp.eq.s32.totalorder %s24, 1
      %p215 = por %p213, %p214
      %p216 = scmp.ne.s32.totalorder %s207, %s208
      %p217 = scmp.eq.s32.totalorder %s24, 0
      %p218 = por %p216, %p217
      %p219 = scmp.ne.s32.totalorder %s207, %s208
      %p220 = scmp.eq.s32.totalorder %s25, 1
      %p221 = por %p219, %p220
      %p223 = scmp.ne.s32.totalorder %s208, %s222
      %p224 = scmp.eq.s32.totalorder %s25, 0
      %p225 = por %p223, %p224
      %s227 = sadd.s32 %s226, 1
      %p230 = scmp.eq.s32.totalorder %s19, 1
      %p231 = scmp.ne.s32.totalorder %s226, %s228
      %p232 = scmp.eq.s32.totalorder %s19, 0
      %p233 = por %p231, %p232
      %p234 = scmp.ne.s32.totalorder %s226, %s228
      %p235 = scmp.eq.s32.totalorder %s24, 1
      %p236 = por %p234, %p235
      %p237 = scmp.ne.s32.totalorder %s228, %s229
      %p238 = scmp.eq.s32.totalorder %s24, 0
      %p239 = por %p237, %p238
      %p240 = scmp.ne.s32.totalorder %s228, %s229
      %p241 = scmp.eq.s32.totalorder %s25, 1
      %p242 = por %p240, %p241
      %p244 = scmp.ne.s32.totalorder %s229, %s243
      %p245 = scmp.eq.s32.totalorder %s25, 0
      %p246 = por %p244, %p245
      %s247 = ssub.s32 %s19, %s26
      %p248 = scmp.eq.s32.totalorder %s247, 0
      %s250 = sadd.s32 %s249, 1
      %s251 = scalar_select %p248, %s249, %s250
      %p254 = pneg %p248
      %p255 = scmp.eq.s32.totalorder %s19, 1
      %p256 = por %p254, %p255
      %p257 = scmp.ne.s32.totalorder %s249, %s252
      %p258 = scmp.eq.s32.totalorder %s19, 0
      %p259 = por %p257, %p258
      %p260 = scmp.ne.s32.totalorder %s249, %s252
      %p261 = scmp.eq.s32.totalorder %s24, 1
      %p262 = por %p260, %p261
      %p263 = scmp.ne.s32.totalorder %s252, %s253
      %p264 = scmp.eq.s32.totalorder %s24, 0
      %p265 = por %p263, %p264
      %p266 = scmp.ne.s32.totalorder %s252, %s253
      %p267 = scmp.eq.s32.totalorder %s25, 1
      %p268 = por %p266, %p267
      %p270 = scmp.ne.s32.totalorder %s253, %s269
      %p271 = scmp.eq.s32.totalorder %s25, 0
      %p272 = por %p270, %p271
      %p273 = scmp.le.s32.totalorder 1, %s19
      %p274 = scmp.lt.s32.totalorder %s19, 3
      %p275 = pnand %p273, %p274
      %p276 = pneg %p275
      // Predicated region
      $region9: #{tpu_custom_call.1} parent=5 // pred_check
        _
      $region10: #{tpu_custom_call.1} parent=5 // pred_check_branch
        %278 = sbr.rel (%p275) target = $region12
      $region11: #{tpu_custom_call.1} parent=5 // pred_region
        %s279 = ssub.s32 %s19, 1
        // Predicated region
        $region13: #{tpu_custom_call.1} parent=11 // pred_check
          %p280 = pneg %p92
        $region14: #{tpu_custom_call.1} parent=11 // pred_check_branch
          %282 = sbr.rel (%p280) target = $region16
        $region15: #{tpu_custom_call.1} parent=11 // pred_region
          _
        $region16: #{tpu_custom_call.1} parent=11 // pred_fallthru
          _
        // Predicated region
        $region17: #{tpu_custom_call.1} parent=11 // pred_check
          %p283 = pneg %p113
        $region18: #{tpu_custom_call.1} parent=11 // pred_check_branch
          %285 = sbr.rel (%p283) target = $region20
        $region19: #{tpu_custom_call.1} parent=11 // pred_region
          _
        $region20: #{tpu_custom_call.1} parent=11 // pred_fallthru
          _
        // Predicated region
        $region21: #{tpu_custom_call.1} parent=11 // pred_check
          %p286 = pneg %p134
        $region22: #{tpu_custom_call.1} parent=11 // pred_check_branch
          %288 = sbr.rel (%p286) target = $region24
        $region23: #{tpu_custom_call.1} parent=11 // pred_region
          _
        $region24: #{tpu_custom_call.1} parent=11 // pred_fallthru
          _
        // Predicated region
        $region25: #{tpu_custom_call.1} parent=11 // pred_check
          %p289 = pneg %p155
        $region26: #{tpu_custom_call.1} parent=11 // pred_check_branch
          %291 = sbr.rel (%p289) target = $region28
        $region27: #{tpu_custom_call.1} parent=11 // pred_region
          _
        $region28: #{tpu_custom_call.1} parent=11 // pred_fallthru
          _
        // Predicated region
        $region29: #{tpu_custom_call.1} parent=11 // pred_check
          %p292 = pneg %p176
        $region30: #{tpu_custom_call.1} parent=11 // pred_check_branch
          %294 = sbr.rel (%p292) target = $region32
        $region31: #{tpu_custom_call.1} parent=11 // pred_region
          _
        $region32: #{tpu_custom_call.1} parent=11 // pred_fallthru
          _
        // Predicated region
        $region33: #{tpu_custom_call.1} parent=11 // pred_check
          %p295 = pneg %p197
        $region34: #{tpu_custom_call.1} parent=11 // pred_check_branch
          %297 = sbr.rel (%p295) target = $region36
        $region35: #{tpu_custom_call.1} parent=11 // pred_region
          _
        $region36: #{tpu_custom_call.1} parent=11 // pred_fallthru
          _
        // Predicated region
        $region37: #{tpu_custom_call.1} parent=11 // pred_check
          %p298 = pneg %p218
        $region38: #{tpu_custom_call.1} parent=11 // pred_check_branch
          %300 = sbr.rel (%p298) target = $region40
        $region39: #{tpu_custom_call.1} parent=11 // pred_region
          _
        $region40: #{tpu_custom_call.1} parent=11 // pred_fallthru
          _
        // Predicated region
        $region41: #{tpu_custom_call.1} parent=11 // pred_check
          %p301 = pneg %p239
        $region42: #{tpu_custom_call.1} parent=11 // pred_check_branch
          %303 = sbr.rel (%p301) target = $region44
        $region43: #{tpu_custom_call.1} parent=11 // pred_region
          _
        $region44: #{tpu_custom_call.1} parent=11 // pred_fallthru
          _
      $region12: #{tpu_custom_call.1} parent=5 // pred_fallthru
        _
      %p304 = scmp.lt.s32.totalorder %s19, 2
      // Predicated region
      $region45: #{tpu_custom_call.1} parent=5 // pred_check
        %p305 = pneg %p304
      $region46: #{tpu_custom_call.1} parent=5 // pred_check_branch
        %307 = sbr.rel (%p305) target = $region48
      $region47: #{tpu_custom_call.1} parent=5 // pred_region
        // Predicated region
        $region49: #{tpu_custom_call.1} parent=47 // pred_check
          %p308 = pneg %p39
        $region50: #{tpu_custom_call.1} parent=47 // pred_check_branch
          %310 = sbr.rel (%p308) target = $region52
        $region51: #{tpu_custom_call.1} parent=47 // pred_region
          %p311 = scmp.lt.s32.totalorder %s19, 1
          %s312 = scalar_select %p311, %s19, 1
          %s313 = smul.addr %s312, 8
          %s314 = scalar_lea.vmem %s0, %s313
        $region52: #{tpu_custom_call.1} parent=47 // pred_fallthru
          _
        // Predicated region
        $region53: #{tpu_custom_call.1} parent=47 // pred_check
          %p315 = pneg %p65
        $region54: #{tpu_custom_call.1} parent=47 // pred_check_branch
          %317 = sbr.rel (%p315) target = $region56
        $region55: #{tpu_custom_call.1} parent=47 // pred_region
          %p318 = scmp.lt.s32.totalorder %s19, 1
          %s319 = scalar_select %p318, %s19, 1
          %s320 = smul.addr %s319, 8
          %s321 = scalar_lea.vmem %s1, %s320
        $region56: #{tpu_custom_call.1} parent=47 // pred_fallthru
          _
      $region48: #{tpu_custom_call.1} parent=5 // pred_fallthru
        _
      %p322 = scmp.le.s32.totalorder 1, %s19
      %p323 = scmp.lt.s32.totalorder %s19, 3
      %p324 = pnand %p322, %p323
      %p325 = pneg %p324
      // Predicated region
      $region57: #{tpu_custom_call.1} parent=5 // pred_check
        _
      $region58: #{tpu_custom_call.1} parent=5 // pred_check_branch
        %327 = sbr.rel (%p324) target = $region60
      $region59: #{tpu_custom_call.1} parent=5 // pred_region
        %s328 = ssub.s32 %s19, 1
        %p329 = scmp.lt.s32.totalorder %s24, 1
        %s330 = scalar_select %p329, %s24, 1
        %s331 = smul.addr %s330, 8
        %s332 = scalar_lea.vmem %s0, %s331
        %p333 = pneg %p45
        %p334 = pneg %p42
        %p335 = scmp.lt.s32.totalorder %s24, 1
        %s336 = scalar_select %p335, %s24, 1
        %s337 = smul.addr %s336, 8
        %s338 = scalar_lea.vmem %s1, %s337
        %p339 = pneg %p71
        %p340 = pneg %p68
        %p341 = pneg %p92
        %p342 = pneg %p89
        %p343 = pneg %p113
        %p344 = pneg %p110
        %p345 = pneg %p134
        %p346 = pneg %p131
        %p347 = pneg %p155
        %p348 = pneg %p152
        %p349 = pneg %p176
        %p350 = pneg %p173
        %p351 = pneg %p197
        %p352 = pneg %p194
        %p353 = pneg %p218
        %p354 = pneg %p215
        %p355 = pneg %p239
        %p356 = pneg %p236
        %p357 = pneg %p265
        %p358 = pneg %p262
        %s359 = sand.u32 %s252, 1
        %s360 = scalar_lea.sflag [#allocation3], %s359
        %s361 = sand.u32 %s252, 1
        %s362 = smul.addr %s361, 8
        %s363 = scalar_lea.vmem [#allocation2], %s362
        %p364 = scmp.lt.s32.totalorder %s24, 1
        %s365 = scalar_select %p364, %s24, 1
        %s366 = smul.addr %s365, 8
        %s367 = scalar_lea.vmem %s0, %s366
        %p368 = scmp.lt.s32.totalorder %s24, 1
        %s369 = scalar_select %p368, %s24, 1
        %s370 = smul.addr %s369, 8
        %s371 = scalar_lea.vmem %s1, %s370
        %v373 = vld [vmem:[%s367] sm:$0xff]
        %v374 = vld [vmem:[%s371] sm:$0xff]
        %v375 = vadd.f32 %v373, %v374
        %v376 = vld [vmem:[%s6] sm:$0x1]
        %v377 = vld [vmem:[%s7] sm:$0x1]
        %vm378 = vcmask 261120
        %v379 = vsel %vm378, %v375, 0.0
        %380 = vadd.xlane.f32.xlu0 %v379
        %v381 = vpop.xlane.xlu0 %380
        %v382 = vrcp.pop 32.0
        %v383 = vmul.f32 %v381, %v382
        %v384 = vsub.f32 %v375, %v383
        %v385 = vmul.f32 %v384, %v384
        %v386 = vsel %vm378, %v385, 0.0
        %387 = vadd.xlane.f32.xlu0 %v386
        %v388 = vpop.xlane.xlu0 %387
        %v389 = vmul.f32 %v388, %v382
        %v390 = vadd.f32 %v389, 1e-05
        %v391 = vrsqrt.pop %v390
        %v392 = vmul.f32 %v384, %v391
        %v394 = vlaneseq
        %v395 = vshrl.u32 %v394, 7
        %v396 = vsub.s32 0, %v395
        %v397 = vrot.slane %v376, %v396
        %v399 = vmul.f32 %v392, %v397
        %v401 = vlaneseq
        %v402 = vshrl.u32 %v401, 7
        %v403 = vsub.s32 0, %v402
        %v404 = vrot.slane %v377, %v403
        %v406 = vadd.f32 %v399, %v404
        %v407 = vpack.c.bf16 %v406, %v406
        %v408 = vld [vmem:[%s2] sm:$0xf]
        %v409 = vld [vmem:[%s2 + $0x4] sm:$0xf]
        %v410 = vld [vmem:[%s2 + $0x8] sm:$0xf]
        %v411 = vld [vmem:[%s2 + $0xc] sm:$0xf]
        %v412 = vld [vmem:[%s3] sm:$0x1]
        %v414 = vlaneseq
        %v415 = vshrl.u32 %v414, 7
        %v416 = vsub.s32 0, %v415
        %v417 = vrot.slane %v412, %v416
        %v423 = vunpack.c.l.b16 %v408
        %v424 = vunpack.c.l.b16 %v409
        %v425 = vunpack.c.l.b16 %v410
        %v426 = vunpack.c.l.b16 %v411
        %v427 = vpack.c.b16 %v424, %v423
        %v428 = vpack.c.b16 %v426, %v425
        %v432 = vsel %vm378, %v407, 0
        %434 = vmatprep.subr.bf16.mxu0 0
        %435 = vmatpush1.bf16.msra.mxu0 0
        %436 = vmatprep.subr.bf16.mxu0 0
        %437 = vmatpush1.bf16.msra.mxu0 0
        %438 = vmatprep.subr.bf16.mxu0 0
        %439 = vmatpush1.bf16.msra.mxu0 0
        %440 = vmatprep.subr.bf16.mxu0 0
        %441 = vmatpush1.bf16.msra.mxu0 0
        %442 = vmatprep.subr.bf16.mxu0 0
        %443 = vmatpush1.bf16.msra.mxu0 0
        %444 = vmatprep.subr.bf16.mxu0 0
        %445 = vmatpush1.bf16.msra.mxu0 0
        %446 = vmatprep.subr.bf16.mxu0 0
        %447 = vmatpush1.bf16.msra.mxu0 %v428
        %448 = vmatprep.subr.bf16.mxu0 0
        %449 = vmatpush1.bf16.msra.mxu0 %v427
        %450 = vmatprep.subr.bf16.mxu0 0
        %451 = vmatpush2.bf16.msra.mxu0 0
        %452 = vmatprep.subr.bf16.mxu0 0
        %453 = vmatpush2.bf16.msra.mxu0 0
        %454 = vmatprep.subr.bf16.mxu0 0
        %455 = vmatpush2.bf16.msra.mxu0 0
        %456 = vmatprep.subr.bf16.mxu0 0
        %457 = vmatpush2.bf16.msra.mxu0 0
        %458 = vmatprep.subr.bf16.mxu0 0
        %459 = vmatpush2.bf16.msra.mxu0 0
        %460 = vmatprep.subr.bf16.mxu0 0
        %461 = vmatpush2.bf16.msra.mxu0 0
        %462 = vmatprep.subr.bf16.mxu0 0
        %463 = vmatpush2.bf16.msra.mxu0 0
        %464 = vmatprep.subr.bf16.mxu0 0
        %465 = vmatpush2.bf16.msra.mxu0 0
        %466 = vmatprep.mubr.bf16.mxu0 0
        %467 = vmatmul.mubr.bf16.gmra.mxu0 %v432
        %v468 = vpop.f32.mrf.mxu0
        %v469 = vadd.f32 %v417, %v468
        %v470 = vpop.f32.mrf.mxu0
        %v471 = vpop.f32.mrf.mxu0
        %v472 = vpop.f32.mrf.mxu0
        %473 = vdwg.mxu0
        %v474 = vmax.f32 %v469, 0.0
        %v475 = vpack.c.bf16 %v474, %v474
        %v476 = vld [vmem:[%s4] sm:$0xf]
        %v477 = vld [vmem:[%s4 + $0x4] sm:$0xf]
        %v478 = vld [vmem:[%s4 + $0x8] sm:$0xf]
        %v479 = vld [vmem:[%s4 + $0xc] sm:$0xf]
        %v480 = vld [vmem:[%s4 + $0x10] sm:$0xf]
        %v481 = vld [vmem:[%s4 + $0x14] sm:$0xf]
        %v482 = vld [vmem:[%s4 + $0x18] sm:$0xf]
        %v483 = vld [vmem:[%s4 + $0x1c] sm:$0xf]
        %v484 = vld [vmem:[%s5] sm:$0x1]
        %v486 = vlaneseq
        %v487 = vshrl.u32 %v486, 7
        %v488 = vsub.s32 0, %v487
        %v489 = vrot.slane %v484, %v488
        %v499 = vunpack.c.l.b16 %v476
        %v500 = vunpack.c.l.b16 %v477
        %v501 = vunpack.c.l.b16 %v478
        %v502 = vunpack.c.l.b16 %v479
        %v503 = vunpack.c.l.b16 %v480
        %v504 = vunpack.c.l.b16 %v481
        %v505 = vunpack.c.l.b16 %v482
        %v506 = vunpack.c.l.b16 %v483
        %v507 = vpack.c.b16 %v500, %v499
        %v508 = vpack.c.b16 %v502, %v501
        %v509 = vpack.c.b16 %v504, %v503
        %v510 = vpack.c.b16 %v506, %v505
        %vm515 = vcmask 523264
        %v517 = vsel %vm515, %v475, 0
        %519 = vmatprep.subr.bf16.mxu0 0
        %520 = vmatpush1.bf16.msra.mxu0 0
        %521 = vmatprep.subr.bf16.mxu0 0
        %522 = vmatpush1.bf16.msra.mxu0 0
        %523 = vmatprep.subr.bf16.mxu0 0
        %524 = vmatpush1.bf16.msra.mxu0 0
        %525 = vmatprep.subr.bf16.mxu0 0
        %526 = vmatpush1.bf16.msra.mxu0 0
        %527 = vmatprep.subr.bf16.mxu0 0
        %528 = vmatpush1.bf16.msra.mxu0 %v510
        %529 = vmatprep.subr.bf16.mxu0 0
        %530 = vmatpush1.bf16.msra.mxu0 %v509
        %531 = vmatprep.subr.bf16.mxu0 0
        %532 = vmatpush1.bf16.msra.mxu0 %v508
        %533 = vmatprep.subr.bf16.mxu0 0
        %534 = vmatpush1.bf16.msra.mxu0 %v507
        %535 = vmatprep.subr.bf16.mxu0 0
        %536 = vmatpush2.bf16.msra.mxu0 0
        %537 = vmatprep.subr.bf16.mxu0 0
        %538 = vmatpush2.bf16.msra.mxu0 0
        %539 = vmatprep.subr.bf16.mxu0 0
        %540 = vmatpush2.bf16.msra.mxu0 0
        %541 = vmatprep.subr.bf16.mxu0 0
        %542 = vmatpush2.bf16.msra.mxu0 0
        %543 = vmatprep.subr.bf16.mxu0 0
        %544 = vmatpush2.bf16.msra.mxu0 0
        %545 = vmatprep.subr.bf16.mxu0 0
        %546 = vmatpush2.bf16.msra.mxu0 0
        %547 = vmatprep.subr.bf16.mxu0 0
        %548 = vmatpush2.bf16.msra.mxu0 0
        %549 = vmatprep.subr.bf16.mxu0 0
        %550 = vmatpush2.bf16.msra.mxu0 0
        %551 = vmatprep.mubr.bf16.mxu0 0
        %552 = vmatmul.mubr.bf16.gmra.mxu0 %v517
        %v553 = vpop.f32.mrf.mxu0
        %v554 = vadd.f32 %v489, %v553
        %v555 = vpop.f32.mrf.mxu0
        %v556 = vpop.f32.mrf.mxu0
        %v557 = vpop.f32.mrf.mxu0
        %558 = vdwg.mxu0
        %v559 = vadd.f32 %v406, %v554
        %v560 = vld [vmem:[%s8] sm:$0x1]
        %v561 = vld [vmem:[%s9] sm:$0x1]
        %v562 = vsel %vm378, %v559, 0.0
        %563 = vadd.xlane.f32.xlu0 %v562
        %v564 = vpop.xlane.xlu0 %563
        %v565 = vmul.f32 %v564, %v382
        %v566 = vsub.f32 %v559, %v565
        %v567 = vmul.f32 %v566, %v566
        %v568 = vsel %vm378, %v567, 0.0
        %569 = vadd.xlane.f32.xlu0 %v568
        %v570 = vpop.xlane.xlu0 %569
        %v571 = vmul.f32 %v570, %v382
        %v572 = vadd.f32 %v571, 1e-05
        %v573 = vrsqrt.pop %v572
        %v574 = vmul.f32 %v566, %v573
        %v576 = vlaneseq
        %v577 = vshrl.u32 %v576, 7
        %v578 = vsub.s32 0, %v577
        %v579 = vrot.slane %v560, %v578
        %v581 = vmul.f32 %v574, %v579
        %v583 = vlaneseq
        %v584 = vshrl.u32 %v583, 7
        %v585 = vsub.s32 0, %v584
        %v586 = vrot.slane %v561, %v585
        %v588 = vadd.f32 %v581, %v586
        %589 = vst.msk [vmem:[%s363] sm:$0xff] %vm378, %v588
        %s590 = sand.u32 %s252, 1
        %s591 = scalar_lea.sflag [#allocation3], %s590
        %s592 = sand.u32 %s252, 1
        %s593 = smul.addr %s592, 8
        %s594 = scalar_lea.vmem [#allocation2], %s593
        // Predicated region
        $region61: #{tpu_custom_call.1} parent=59 // pred_check
          %p595 = pneg %p262
        $region62: #{tpu_custom_call.1} parent=59 // pred_check_branch
          %597 = sbr.rel (%p595) target = $region64
        $region63: #{tpu_custom_call.1} parent=59 // pred_region
          %s599 = ssub.s32 128, 128
          %600 = vsyncadd %s591, %s599
          %s601 = smul.addr %s24, 128
          %s602 = scalar_lea.hbm %s10, %s601
          %s604 = sshll.u32 %s594, 4
          %s605 = int_to_ptr.vmem [resolvable:$true] %s604
          %607 = dma.vmem_to_hbm [thread:$0]  %s605, 128, %s602, %s591
        $region64: #{tpu_custom_call.1} parent=59 // pred_fallthru
          _
      $region60: #{tpu_custom_call.1} parent=5 // pred_fallthru
        _
      %p608 = scmp.le.s32.totalorder 2, %s19
      // Predicated region
      $region65: #{tpu_custom_call.1} parent=5 // pred_check
        %p609 = pneg %p608
      $region66: #{tpu_custom_call.1} parent=5 // pred_check_branch
        %611 = sbr.rel (%p609) target = $region68
      $region67: #{tpu_custom_call.1} parent=5 // pred_region
        %s612 = ssub.s32 %s19, 2
        // Predicated region
        $region69: #{tpu_custom_call.1} parent=67 // pred_check
          %p613 = pneg %p268
        $region70: #{tpu_custom_call.1} parent=67 // pred_check_branch
          %615 = sbr.rel (%p613) target = $region72
        $region71: #{tpu_custom_call.1} parent=67 // pred_region
          %s616 = sand.u32 %s253, 1
          %s617 = scalar_lea.sflag [#allocation3], %s616
          %s618 = sand.u32 %s253, 1
          %s619 = smul.addr %s618, 8
          %s620 = scalar_lea.vmem [#allocation2], %s619
          %621 = dma.done %s617, 128
        $region72: #{tpu_custom_call.1} parent=67 // pred_fallthru
          _
      $region68: #{tpu_custom_call.1} parent=5 // pred_fallthru
        _
    $region6: #{tpu_custom_call.1} parent=1 // loop_footer
      %s23 = sadd.s32 1, %s19
    $region7: #{tpu_custom_call.1} parent=1 // loop_footer_branch
      %18 = sbr.rel target = $region3
    $region8: #{tpu_custom_call.1} parent=1 // loop_exit
      _
    %622 = vsyncpa [#allocation3], 1
    %s623 = scalar_lea.sflag [#allocation3], 1
    %624 = vsyncpa %s623, 1

</llo_original>
